<compile_context>
chip_gen: v6e
topology: v6e:2x2x1
jax: 0.10.0
libtpu: 0.0.40
codegen_flags: <defaults>
</compile_context>

<pallas_src>
import jax
import jax.numpy as jnp
from jax.experimental import pallas as pl
from jax.experimental.pallas import tpu as pltpu

# small, forward-consistent shapes
B, L, V, H, Z = 2, 8, 16, 32, 16      # batch, seq len, vocab, hidden, dim_z
VP = 128                              # vocab padded to one full lane width
KL_BETA = 0.5                         # args.kl_beta


def make_vae_kernel(batch_size, seq_len, vocab_pad, hidden, dim_z):
    inv_b = 1.0 / float(batch_size)
    inv_l = 1.0 / float(seq_len)
    rows = batch_size * seq_len

    def kernel(scalars_ref,                         # SMEM (2,): [kl_weight, kl_beta]
               ids_ref,                             # (B*L, 1) int32 target token ids
               eenc_ref, edec_ref,                  # (B, L, H) bf16 gathered embeddings
               wmulv_ref, bmulv_ref,                # fused mu/logvar projection
               eps_ref,                             # (B, Z) f32 reparam noise
               wz_ref, wout_ref, bout_ref,          # decoder params (W_out/b_out lane-padded)
               out_ref):                            # (1, 128) packed losses
        # ------------------------- encoder (whole batch) -------------------------
        h_rows = [jnp.sum(eenc_ref[b].astype(jnp.float32), axis=0, keepdims=True) * inv_l
                  for b in range(batch_size)]
        h = jnp.concatenate(h_rows, axis=0)                             # [B, H] mean-pool
        mulv = jnp.dot(h.astype(jnp.bfloat16), wmulv_ref[...],
                       preferred_element_type=jnp.float32) + bmulv_ref[...]  # [B, 2Z]
        mean = mulv[:, :dim_z]                                          # [B, Z]
        logvar = mulv[:, dim_z:2 * dim_z]                               # [B, Z]
        std = jnp.exp(0.5 * logvar)
        var = std * std                                                 # exp(logvar) == std^2 reuse
        z = mean + eps_ref[...] * std                                   # [B, Z]
        kld_sum = jnp.sum(0.5 * (mean * mean + var - logvar - 1.0),
                          keepdims=True)                                # (1,1)

        # ------------------------- decoder (whole batch) -------------------------
        zh = jnp.dot(z.astype(jnp.bfloat16), wz_ref[...],
                     preferred_element_type=jnp.float32)                # [B, H]
        hdec_rows = [jnp.tanh(edec_ref[b].astype(jnp.float32) + zh[b:b + 1, :])
                     for b in range(batch_size)]
        hdec = jnp.concatenate(hdec_rows, axis=0)                       # [B*L, H]
        logits = jnp.dot(hdec.astype(jnp.bfloat16), wout_ref[...],
                         preferred_element_type=jnp.float32) + bout_ref[...]  # [B*L, Vp]

        lmax = jnp.max(logits, axis=-1, keepdims=True)
        lse = jnp.log(jnp.sum(jnp.exp(logits - lmax), axis=-1,
                              keepdims=True)) + lmax                    # [B*L, 1]
        lane = jax.lax.broadcasted_iota(jnp.int32, (rows, vocab_pad), 1)
        tgt_logit = jnp.sum(jnp.where(lane == ids_ref[...], logits, 0.0),
                            axis=-1, keepdims=True)                     # [B*L, 1]
        rec_sum = jnp.sum(lse - tgt_logit, keepdims=True)               # (1,1)

        # ------------------- combine + single lane-dense store -------------------
        kl_weight = scalars_ref[0]
        kl_beta = scalars_ref[1]
        loss_rec = rec_sum * inv_b                                      # mean over batch of seq sums
        loss_kld = kld_sum * inv_b * kl_beta                            # beta-scaled batch mean
        loss_total = loss_rec + loss_kld * kl_weight
        lane_o = jax.lax.broadcasted_iota(jnp.int32, (1, 128), 1)
        out_ref[...] = jnp.where(lane_o == 0, loss_total,
                       jnp.where(lane_o == 1, loss_rec,
                       jnp.where(lane_o == 2, loss_kld, 0.0)))

    return kernel


def init_params(key):
    ks = jax.random.split(key, 6)

    def lin(k, fan_in, shape):
        w = jax.random.normal(k, shape, jnp.float32) / jnp.sqrt(float(fan_in))
        return w.astype(jnp.bfloat16)          # bf16 MXU operands (f32 accumulation in-kernel)

    return {
        "E_enc": lin(ks[0], V, (V, H)),
        "W_mu":  lin(ks[1], H, (H, Z)),
        "b_mu":  jnp.zeros((1, Z), jnp.float32),
        "W_lv":  lin(ks[2], H, (H, Z)),
        "b_lv":  jnp.zeros((1, Z), jnp.float32),
        "E_dec": lin(ks[3], V, (V, H)),
        "W_z":   lin(ks[4], Z, (Z, H)),
        "W_out": lin(ks[5], H, (H, V)),
        "b_out": jnp.zeros((1, V), jnp.float32),
    }


def vae_forward_pallas(x, kl_weight, params, eps):
    ids = x.reshape(B * L).astype(jnp.int32)
    # embedding gather instead of one-hot matmuls (V x fewer FLOPs / bytes)
    emb_enc = jnp.take(params["E_enc"], ids, axis=0).reshape(B, L, H)   # bf16
    emb_dec = jnp.take(params["E_dec"], ids, axis=0).reshape(B, L, H)   # bf16
    ids_col = ids.reshape(B * L, 1)
    scalars = jnp.array([kl_weight, KL_BETA], dtype=jnp.float32)

    # fuse mu/logvar projection; lane-pad vocab (zero weight cols, -1e9 bias lanes)
    w_mulv = jnp.concatenate([params["W_mu"], params["W_lv"]], axis=1)          # [H, 2Z] bf16
    b_mulv = jnp.concatenate([params["b_mu"], params["b_lv"]], axis=1)          # [1, 2Z] f32
    w_out_p = jnp.pad(params["W_out"], ((0, 0), (0, VP - V)))                   # [H, VP] bf16
    b_out_p = jnp.pad(params["b_out"], ((0, 0), (0, VP - V)),
                      constant_values=-1e9)                                     # [1, VP] f32

    inputs = (scalars, ids_col, emb_enc, emb_dec,
              w_mulv, b_mulv, eps, params["W_z"], w_out_p, b_out_p)

    in_specs = [pl.BlockSpec(memory_space=pltpu.MemorySpace.SMEM)] + \
               [pl.BlockSpec(memory_space=pltpu.MemorySpace.VMEM)] * (len(inputs) - 1)

    flops = 2 * B * H * (2 * Z) + 2 * B * Z * H + 2 * (B * L) * H * VP
    transcendentals = B * Z + B * L * H + B * L * VP + B * L
    bytes_accessed = sum(int(a.size) * a.dtype.itemsize for a in inputs) + 128 * 4

    out = pl.pallas_call(
        make_vae_kernel(B, L, VP, H, Z),
        out_shape=jax.ShapeDtypeStruct((1, 128), jnp.float32),
        in_specs=in_specs,
        out_specs=pl.BlockSpec(memory_space=pltpu.MemorySpace.VMEM),
        compiler_params=pltpu.CompilerParams(vmem_limit_bytes=32 * 1024 * 1024),
        cost_estimate=pl.CostEstimate(flops=flops, transcendentals=transcendentals,
                                      bytes_accessed=bytes_accessed),
    )(*inputs)
    return out[0, 0], out[0, 1], out[0, 2]


def vae_forward_ref(x, kl_weight, params, eps):
    """Pure-JAX reference of the same forward (bf16 weights, f32 accumulation)."""
    ids = x.reshape(-1)
    emb_enc = jnp.take(params["E_enc"], ids, axis=0).astype(jnp.float32).reshape(B, L, H)
    h = emb_enc.mean(axis=1)
    h_bf = h.astype(jnp.bfloat16)
    mean = jnp.dot(h_bf, params["W_mu"], preferred_element_type=jnp.float32) + params["b_mu"]
    logvar = jnp.dot(h_bf, params["W_lv"], preferred_element_type=jnp.float32) + params["b_lv"]
    std = jnp.exp(0.5 * logvar)
    z = mean + eps * std
    loss_kld = 0.5 * jnp.sum(mean**2 + std * std - logvar - 1.0, axis=1).mean() * KL_BETA
    emb_dec = jnp.take(params["E_dec"], ids, axis=0).astype(jnp.float32).reshape(B, L, H)
    zh = jnp.dot(z.astype(jnp.bfloat16), params["W_z"], preferred_element_type=jnp.float32)
    hdec = jnp.tanh(emb_dec + zh[:, None, :])
    logits = jnp.dot(hdec.reshape(B * L, H).astype(jnp.bfloat16), params["W_out"],
                     preferred_element_type=jnp.float32) + params["b_out"]
    logp = jax.nn.log_softmax(logits, axis=-1)
    nll = -logp[jnp.arange(B * L), ids]
    loss_rec = nll.reshape(B, L).sum(axis=1).mean()
    loss_total = loss_rec + loss_kld * kl_weight
    return loss_total, loss_rec, loss_kld


if __name__ == "__main__":
    key = jax.random.PRNGKey(0)
    kx, keps, kp = jax.random.split(key, 3)

    x = jax.random.randint(kx, (B, L), 0, V, dtype=jnp.int32)   # token ids
    eps = jax.random.normal(keps, (B, Z), jnp.float32)          # reparameterization noise
    params = init_params(kp)
    kl_weight = 0.7

    out = vae_forward_pallas(x, kl_weight, params, eps)
    out = jax.block_until_ready(out)
    ref = vae_forward_ref(x, kl_weight, params, eps)

    for got, want in zip(out, ref):
        assert jnp.isfinite(got), "non-finite kernel output"
        assert jnp.allclose(got, want, rtol=5e-3, atol=2e-3), (got, want)

    print("KERNEL_OK")
</pallas_src>

<mosaic_0001>
module attributes {stable_mosaic.version = 11 : i64} {
  func.func @kernel(%arg0: memref<2xf32, #tpu.memory_space<smem>>, %arg1: memref<16x1xi32, #tpu.memory_space<vmem>>, %arg2: memref<2x8x32xbf16, #tpu.memory_space<vmem>>, %arg3: memref<2x8x32xbf16, #tpu.memory_space<vmem>>, %arg4: memref<32x32xbf16, #tpu.memory_space<vmem>>, %arg5: memref<1x32xf32, #tpu.memory_space<vmem>>, %arg6: memref<2x16xf32, #tpu.memory_space<vmem>>, %arg7: memref<16x32xbf16, #tpu.memory_space<vmem>>, %arg8: memref<32x128xbf16, #tpu.memory_space<vmem>>, %arg9: memref<1x128xf32, #tpu.memory_space<vmem>>, %arg10: memref<1x128xf32, #tpu.memory_space<vmem>>) attributes {dimension_semantics = [], scalar_prefetch = 0 : i64, scratch_operands = 0 : i64, tpu.core_type = #tpu.core_type<tc>} {
    %c0 = arith.constant 0 : index
    %c0_0 = arith.constant 0 : index
    %c0_1 = arith.constant 0 : index
    %0 = vector.load %arg2[%c0, %c0_0, %c0_1] : memref<2x8x32xbf16, #tpu.memory_space<vmem>>, vector<1x8x32xbf16>
    %1 = vector.shape_cast %0 : vector<1x8x32xbf16> to vector<8x32xbf16>
    %2 = arith.extf %1 : vector<8x32xbf16> to vector<8x32xf32>
    %cst = arith.constant dense<0.000000e+00> : vector<32xf32>
    %3 = vector.multi_reduction <add>, %2, %cst [0] : vector<8x32xf32> to vector<32xf32>
    %4 = vector.shape_cast %3 : vector<32xf32> to vector<1x32xf32>
    %cst_2 = arith.constant 1.250000e-01 : f32
    %5 = vector.broadcast %cst_2 : f32 to vector<1x32xf32>
    %6 = arith.mulf %4, %5 : vector<1x32xf32>
    %c1 = arith.constant 1 : index
    %c0_3 = arith.constant 0 : index
    %c0_4 = arith.constant 0 : index
    %7 = vector.load %arg2[%c1, %c0_3, %c0_4] : memref<2x8x32xbf16, #tpu.memory_space<vmem>>, vector<1x8x32xbf16>
    %8 = vector.shape_cast %7 : vector<1x8x32xbf16> to vector<8x32xbf16>
    %9 = arith.extf %8 : vector<8x32xbf16> to vector<8x32xf32>
    %cst_5 = arith.constant dense<0.000000e+00> : vector<32xf32>
    %10 = vector.multi_reduction <add>, %9, %cst_5 [0] : vector<8x32xf32> to vector<32xf32>
    %11 = vector.shape_cast %10 : vector<32xf32> to vector<1x32xf32>
    %cst_6 = arith.constant 1.250000e-01 : f32
    %12 = vector.broadcast %cst_6 : f32 to vector<1x32xf32>
    %13 = arith.mulf %11, %12 : vector<1x32xf32>
    %14 = tpu.concatenate %6, %13 in 0 : vector<1x32xf32>, vector<1x32xf32> -> vector<2x32xf32>
    %15 = arith.truncf %14 : vector<2x32xf32> to vector<2x32xbf16>
    %c0_7 = arith.constant 0 : index
    %c0_8 = arith.constant 0 : index
    %16 = vector.load %arg4[%c0_7, %c0_8] : memref<32x32xbf16, #tpu.memory_space<vmem>>, vector<32x32xbf16>
    %cst_9 = arith.constant dense<0.000000e+00> : vector<2x32xf32>
    %17 = tpu.matmul %15, %16, %cst_9 {dimension_numbers = #tpu.dot_dimension_numbers<[1], [0], [0], [1], [0, 0, 1, 1], [], []>} : vector<2x32xbf16>, vector<32x32xbf16>, vector<2x32xf32> -> vector<2x32xf32>
    %c0_10 = arith.constant 0 : index
    %c0_11 = arith.constant 0 : index
    %18 = vector.load %arg5[%c0_10, %c0_11] : memref<1x32xf32, #tpu.memory_space<vmem>>, vector<1x32xf32>
    %19 = vector.broadcast %18 : vector<1x32xf32> to vector<2x32xf32>
    %20 = arith.addf %17, %19 : vector<2x32xf32>
    %21 = vector.extract_strided_slice %20 {offsets = [0, 0], sizes = [2, 16], strides = [1, 1]} : vector<2x32xf32> to vector<2x16xf32>
    %22 = vector.extract_strided_slice %20 {offsets = [0, 16], sizes = [2, 16], strides = [1, 1]} : vector<2x32xf32> to vector<2x16xf32>
    %cst_12 = arith.constant 5.000000e-01 : f32
    %23 = vector.broadcast %cst_12 : f32 to vector<2x16xf32>
    %24 = arith.mulf %23, %22 : vector<2x16xf32>
    %25 = math.exp %24 : vector<2x16xf32>
    %26 = arith.mulf %25, %25 : vector<2x16xf32>
    %c0_13 = arith.constant 0 : index
    %c0_14 = arith.constant 0 : index
    %27 = vector.load %arg6[%c0_13, %c0_14] : memref<2x16xf32, #tpu.memory_space<vmem>>, vector<2x16xf32>
    %28 = arith.mulf %27, %25 : vector<2x16xf32>
    %29 = arith.addf %21, %28 : vector<2x16xf32>
    %30 = arith.mulf %21, %21 : vector<2x16xf32>
    %31 = arith.addf %30, %26 : vector<2x16xf32>
    %32 = arith.subf %31, %22 : vector<2x16xf32>
    %cst_15 = arith.constant 1.000000e+00 : f32
    %33 = vector.broadcast %cst_15 : f32 to vector<2x16xf32>
    %34 = arith.subf %32, %33 : vector<2x16xf32>
    %cst_16 = arith.constant 5.000000e-01 : f32
    %35 = vector.broadcast %cst_16 : f32 to vector<2x16xf32>
    %36 = arith.mulf %35, %34 : vector<2x16xf32>
    %37 = vector.shape_cast %36 : vector<2x16xf32> to vector<1x2x16xf32>
    %cst_17 = arith.constant dense<0.000000e+00> : vector<1xf32>
    %38 = vector.multi_reduction <add>, %37, %cst_17 [1, 2] : vector<1x2x16xf32> to vector<1xf32>
    %39 = vector.shape_cast %38 : vector<1xf32> to vector<1x1x1xf32>
    %40 = vector.extract %39[0, 0, 0] : f32 from vector<1x1x1xf32>
    %41 = vector.broadcast %40 : f32 to vector<1x1xf32>
    %42 = arith.truncf %29 : vector<2x16xf32> to vector<2x16xbf16>
    %c0_18 = arith.constant 0 : index
    %c0_19 = arith.constant 0 : index
    %43 = vector.load %arg7[%c0_18, %c0_19] : memref<16x32xbf16, #tpu.memory_space<vmem>>, vector<16x32xbf16>
    %cst_20 = arith.constant dense<0.000000e+00> : vector<2x32xf32>
    %44 = tpu.matmul %42, %43, %cst_20 {dimension_numbers = #tpu.dot_dimension_numbers<[1], [0], [0], [1], [0, 0, 1, 1], [], []>} : vector<2x16xbf16>, vector<16x32xbf16>, vector<2x32xf32> -> vector<2x32xf32>
    %c0_21 = arith.constant 0 : index
    %c0_22 = arith.constant 0 : index
    %c0_23 = arith.constant 0 : index
    %45 = vector.load %arg3[%c0_21, %c0_22, %c0_23] : memref<2x8x32xbf16, #tpu.memory_space<vmem>>, vector<1x8x32xbf16>
    %46 = vector.shape_cast %45 : vector<1x8x32xbf16> to vector<8x32xbf16>
    %47 = arith.extf %46 : vector<8x32xbf16> to vector<8x32xf32>
    %48 = vector.extract_strided_slice %44 {offsets = [0, 0], sizes = [1, 32], strides = [1, 1]} : vector<2x32xf32> to vector<1x32xf32>
    %49 = vector.broadcast %48 : vector<1x32xf32> to vector<8x32xf32>
    %50 = arith.addf %47, %49 : vector<8x32xf32>
    %51 = math.tanh %50 : vector<8x32xf32>
    %c1_24 = arith.constant 1 : index
    %c0_25 = arith.constant 0 : index
    %c0_26 = arith.constant 0 : index
    %52 = vector.load %arg3[%c1_24, %c0_25, %c0_26] : memref<2x8x32xbf16, #tpu.memory_space<vmem>>, vector<1x8x32xbf16>
    %53 = vector.shape_cast %52 : vector<1x8x32xbf16> to vector<8x32xbf16>
    %54 = arith.extf %53 : vector<8x32xbf16> to vector<8x32xf32>
    %55 = vector.extract_strided_slice %44 {offsets = [1, 0], sizes = [1, 32], strides = [1, 1]} : vector<2x32xf32> to vector<1x32xf32>
    %56 = vector.broadcast %55 : vector<1x32xf32> to vector<8x32xf32>
    %57 = arith.addf %54, %56 : vector<8x32xf32>
    %58 = math.tanh %57 : vector<8x32xf32>
    %59 = tpu.concatenate %51, %58 in 0 : vector<8x32xf32>, vector<8x32xf32> -> vector<16x32xf32>
    %60 = arith.truncf %59 : vector<16x32xf32> to vector<16x32xbf16>
    %c0_27 = arith.constant 0 : index
    %c0_28 = arith.constant 0 : index
    %61 = vector.load %arg8[%c0_27, %c0_28] : memref<32x128xbf16, #tpu.memory_space<vmem>>, vector<32x128xbf16>
    %cst_29 = arith.constant dense<0.000000e+00> : vector<16x128xf32>
    %62 = tpu.matmul %60, %61, %cst_29 {dimension_numbers = #tpu.dot_dimension_numbers<[1], [0], [0], [1], [0, 0, 1, 1], [], []>} : vector<16x32xbf16>, vector<32x128xbf16>, vector<16x128xf32> -> vector<16x128xf32>
    %c0_30 = arith.constant 0 : index
    %c0_31 = arith.constant 0 : index
    %63 = vector.load %arg9[%c0_30, %c0_31] : memref<1x128xf32, #tpu.memory_space<vmem>>, vector<1x128xf32>
    %64 = vector.broadcast %63 : vector<1x128xf32> to vector<16x128xf32>
    %65 = arith.addf %62, %64 : vector<16x128xf32>
    %cst_32 = arith.constant dense<0xFF800000> : vector<16xf32>
    %66 = vector.multi_reduction <maximumf>, %65, %cst_32 [1] : vector<16x128xf32> to vector<16xf32>
    %67 = vector.shape_cast %66 : vector<16xf32> to vector<16x1xf32>
    %68 = vector.broadcast %67 : vector<16x1xf32> to vector<16x128xf32>
    %69 = arith.subf %65, %68 : vector<16x128xf32>
    %70 = math.exp %69 : vector<16x128xf32>
    %cst_33 = arith.constant dense<0.000000e+00> : vector<16xf32>
    %71 = vector.multi_reduction <add>, %70, %cst_33 [1] : vector<16x128xf32> to vector<16xf32>
    %72 = vector.shape_cast %71 : vector<16xf32> to vector<16x1xf32>
    %73 = math.log %72 : vector<16x1xf32>
    %74 = arith.addf %73, %67 : vector<16x1xf32>
    %75 = tpu.iota {dimensions = array<i32: 1>} : vector<16x128xi32>
    %c0_34 = arith.constant 0 : index
    %c0_35 = arith.constant 0 : index
    %76 = vector.load %arg1[%c0_34, %c0_35] : memref<16x1xi32, #tpu.memory_space<vmem>>, vector<16x1xi32>
    %77 = vector.broadcast %76 : vector<16x1xi32> to vector<16x128xi32>
    %78 = arith.cmpi eq, %75, %77 : vector<16x128xi32>
    %cst_36 = arith.constant 0.000000e+00 : f32
    %79 = vector.broadcast %cst_36 : f32 to vector<16x128xf32>
    %80 = arith.select %78, %65, %79 : vector<16x128xi1>, vector<16x128xf32>
    %cst_37 = arith.constant dense<0.000000e+00> : vector<16xf32>
    %81 = vector.multi_reduction <add>, %80, %cst_37 [1] : vector<16x128xf32> to vector<16xf32>
    %82 = vector.shape_cast %81 : vector<16xf32> to vector<16x1xf32>
    %83 = arith.subf %74, %82 : vector<16x1xf32>
    %84 = vector.shape_cast %83 : vector<16x1xf32> to vector<1x16x1xf32>
    %cst_38 = arith.constant dense<0.000000e+00> : vector<1xf32>
    %85 = vector.multi_reduction <add>, %84, %cst_38 [1, 2] : vector<1x16x1xf32> to vector<1xf32>
    %86 = vector.shape_cast %85 : vector<1xf32> to vector<1x1x1xf32>
    %87 = vector.extract %86[0, 0, 0] : f32 from vector<1x1x1xf32>
    %88 = vector.broadcast %87 : f32 to vector<1x1xf32>
    %c0_39 = arith.constant 0 : index
    %89 = memref.load %arg0[%c0_39] : memref<2xf32, #tpu.memory_space<smem>>
    %c1_40 = arith.constant 1 : index
    %90 = memref.load %arg0[%c1_40] : memref<2xf32, #tpu.memory_space<smem>>
    %cst_41 = arith.constant 5.000000e-01 : f32
    %91 = vector.broadcast %cst_41 : f32 to vector<1x1xf32>
    %92 = arith.mulf %88, %91 : vector<1x1xf32>
    %cst_42 = arith.constant 5.000000e-01 : f32
    %93 = vector.broadcast %cst_42 : f32 to vector<1x1xf32>
    %94 = arith.mulf %41, %93 : vector<1x1xf32>
    %95 = vector.broadcast %90 : f32 to vector<1x1xf32>
    %96 = arith.mulf %94, %95 : vector<1x1xf32>
    %97 = vector.broadcast %89 : f32 to vector<1x1xf32>
    %98 = arith.mulf %96, %97 : vector<1x1xf32>
    %99 = arith.addf %92, %98 : vector<1x1xf32>
    %100 = tpu.iota {dimensions = array<i32: 1>} : vector<1x128xi32>
    %c0_i32 = arith.constant 0 : i32
    %101 = vector.broadcast %c0_i32 : i32 to vector<1x128xi32>
    %102 = arith.cmpi eq, %100, %101 : vector<1x128xi32>
    %c1_i32 = arith.constant 1 : i32
    %103 = vector.broadcast %c1_i32 : i32 to vector<1x128xi32>
    %104 = arith.cmpi eq, %100, %103 : vector<1x128xi32>
    %c2_i32 = arith.constant 2 : i32
    %105 = vector.broadcast %c2_i32 : i32 to vector<1x128xi32>
    %106 = arith.cmpi eq, %100, %105 : vector<1x128xi32>
    %cst_43 = arith.constant 0.000000e+00 : f32
    %107 = vector.shape_cast %96 : vector<1x1xf32> to vector<1x1xf32>
    %108 = vector.broadcast %107 : vector<1x1xf32> to vector<1x128xf32>
    %109 = vector.broadcast %cst_43 : f32 to vector<1x128xf32>
    %110 = arith.select %106, %108, %109 : vector<1x128xi1>, vector<1x128xf32>
    %111 = vector.shape_cast %92 : vector<1x1xf32> to vector<1x1xf32>
    %112 = vector.broadcast %111 : vector<1x1xf32> to vector<1x128xf32>
    %113 = arith.select %104, %112, %110 : vector<1x128xi1>, vector<1x128xf32>
    %114 = vector.shape_cast %99 : vector<1x1xf32> to vector<1x1xf32>
    %115 = vector.broadcast %114 : vector<1x1xf32> to vector<1x128xf32>
    %116 = arith.select %102, %115, %113 : vector<1x128xi1>, vector<1x128xf32>
    %c0_44 = arith.constant 0 : index
    %c0_45 = arith.constant 0 : index
    %117 = vector.load %arg10[%c0_44, %c0_45] : memref<1x128xf32, #tpu.memory_space<vmem>>, vector<1x128xf32>
    tpu.vector_store %arg10[%c0_44, %c0_45], %116 {strides = array<i32>} : memref<1x128xf32, #tpu.memory_space<vmem>>, vector<1x128xf32>,
    return
  }
}

</mosaic_0001>

<llo_original>
// kernel: tpu_custom_call.1
$region0: #{tpu_custom_call.1}
  #allocation0 [shape = 'u32[]', space=smem, size = 0x4, offset = 0x4, fixed_abs, tag = 'smem constant byte address 0x4 - core index']
  #allocation1 [shape = 'u32[144,128]{1,0:T(1,128)}', space=vmem, size = 0x12000, scoped, tag = 'internal scratch']
  %s0 = inlined_call_operand.hbm [shape: f32[2], index: 0, kind: input, shape index: {}]
  %s1 = inlined_call_operand.vmem [shape: s32[16,1], index: 1, kind: input, shape index: {}]
  %s2 = inlined_call_operand.vmem [shape: bf16[2,8,32], index: 2, kind: input, shape index: {}]
  %s3 = inlined_call_operand.hbm [shape: bf16[2,8,32], index: 3, kind: input, shape index: {}]
  %s4 = inlined_call_operand.vmem [shape: bf16[32,32], index: 4, kind: input, shape index: {}]
  %s5 = inlined_call_operand.hbm [shape: f32[1,32], index: 5, kind: input, shape index: {}]
  %s6 = inlined_call_operand.vmem [shape: f32[2,16], index: 6, kind: input, shape index: {}]
  %s7 = inlined_call_operand.hbm [shape: bf16[16,32], index: 7, kind: input, shape index: {}]
  %s8 = inlined_call_operand.hbm [shape: bf16[32,128], index: 8, kind: input, shape index: {}]
  %s9 = inlined_call_operand.vmem [shape: f32[1,128], index: 9, kind: input, shape index: {}]
  %s10 = inlined_call_operand.hbm [shape: f32[1,128], index: 10, kind: output, shape index: {}]
  %s11 = sld [smem:[#allocation0]]
  $region70: #{tpu_custom_call.1} parent=0
    _
  %s13 = ssub.s32 1, %s11
  %s14 = scalar_select 0, %s13, %s11
  $region1: #{tpu_custom_call.1} parent=0
    #allocation2 [shape = 'u8[512]{0}', space=smem, size = 0x200, scoped, tag = 'input window, operand 0, single buffered']
    #allocation3 [shape = 's32[1]{0}', space=sflag, size = 0x4, scoped, tag = 'scoped memory for tpu_custom_call.1']
    #allocation4 [shape = 's32[1]{0}', space=sflag, size = 0x4, scoped, tag = 'scoped memory for tpu_custom_call.1']
    #allocation5 [shape = 's32[1]{0}', space=sflag, size = 0x4, scoped, tag = 'scoped memory for tpu_custom_call.1']
    #allocation6 [shape = 'u8[4096]{0}', space=vmem, size = 0x1000, scoped, tag = 'input window, operand 3, single buffered']
    #allocation7 [shape = 'u8[512]{0}', space=vmem, size = 0x400, scoped, tag = 'input window, operand 5, single buffered']
    #allocation8 [shape = 's32[1]{0}', space=sflag, size = 0x4, scoped, tag = 'scoped memory for tpu_custom_call.1']
    #allocation9 [shape = 'u8[4096]{0}', space=vmem, size = 0x1000, scoped, tag = 'input window, operand 7, single buffered']
    #allocation10 [shape = 'u8[8192]{0}', space=vmem, size = 0x2000, scoped, tag = 'input window, operand 8, single buffered']
    #allocation11 [shape = 's32[1]{0}', space=sflag, size = 0x4, scoped, tag = 'scoped memory for tpu_custom_call.1']
    #allocation12 [shape = 'u8[512]{0}', space=vmem, size = 0x400, scoped, tag = 'output window, operand 0, single buffered']
    %15 = vsyncpa [#allocation5], 0
    %16 = vsyncpa [#allocation3], 0
    %17 = vsyncpa [#allocation8], 0
    %18 = vsyncpa [#allocation11], 0
    %19 = vsyncpa [#allocation4], 0
    // Predicated region
    $region2: #{tpu_custom_call.1} parent=1 // pred_check
      _
    $region3: #{tpu_custom_call.1} parent=1 // pred_check_branch
      %21 = sbr.rel (0) target = $region5
    $region4: #{tpu_custom_call.1} parent=1 // pred_region
      %s23 = ssub.s32 16, 16
      %24 = vsyncadd [#allocation5], %s23
      %27 = dma.hbm_to_smem %s0, 16, [#allocation2], [#allocation5]
    $region5: #{tpu_custom_call.1} parent=1 // pred_fallthru
      _
    // Predicated region
    $region6: #{tpu_custom_call.1} parent=1 // pred_check
      _
    $region7: #{tpu_custom_call.1} parent=1 // pred_check_branch
      %29 = sbr.rel (0) target = $region9
    $region8: #{tpu_custom_call.1} parent=1 // pred_region
      _
    $region9: #{tpu_custom_call.1} parent=1 // pred_fallthru
      _
    // Predicated region
    $region10: #{tpu_custom_call.1} parent=1 // pred_check
      _
    $region11: #{tpu_custom_call.1} parent=1 // pred_check_branch
      %31 = sbr.rel (0) target = $region13
    $region12: #{tpu_custom_call.1} parent=1 // pred_region
      _
    $region13: #{tpu_custom_call.1} parent=1 // pred_fallthru
      _
    // Predicated region
    $region14: #{tpu_custom_call.1} parent=1 // pred_check
      _
    $region15: #{tpu_custom_call.1} parent=1 // pred_check_branch
      %33 = sbr.rel (0) target = $region17
    $region16: #{tpu_custom_call.1} parent=1 // pred_region
      %s35 = ssub.s32 128, 128
      %36 = vsyncadd [#allocation3], %s35
      %s37 = sshll.u32 [#allocation6], 4
      %s38 = int_to_ptr.vmem [resolvable:$true] %s37
      %43 = dma.hbm_to_vmem [thread:$0]  %s3, 128, %s38, [#allocation3], 64, 64, 4
    $region17: #{tpu_custom_call.1} parent=1 // pred_fallthru
      _
    // Predicated region
    $region18: #{tpu_custom_call.1} parent=1 // pred_check
      _
    $region19: #{tpu_custom_call.1} parent=1 // pred_check_branch
      %45 = sbr.rel (0) target = $region21
    $region20: #{tpu_custom_call.1} parent=1 // pred_region
      _
    $region21: #{tpu_custom_call.1} parent=1 // pred_fallthru
      _
    // Predicated region
    $region22: #{tpu_custom_call.1} parent=1 // pred_check
      _
    $region23: #{tpu_custom_call.1} parent=1 // pred_check_branch
      %47 = sbr.rel (0) target = $region25
    $region24: #{tpu_custom_call.1} parent=1 // pred_region
      %s49 = ssub.s32 16, 16
      %50 = vsyncadd [#allocation8], %s49
      %s52 = sshll.u32 [#allocation7], 4
      %s53 = int_to_ptr.vmem [resolvable:$true] %s52
      %55 = dma.hbm_to_vmem [thread:$0]  %s5, 16, %s53, [#allocation8]
    $region25: #{tpu_custom_call.1} parent=1 // pred_fallthru
      _
    // Predicated region
    $region26: #{tpu_custom_call.1} parent=1 // pred_check
      _
    $region27: #{tpu_custom_call.1} parent=1 // pred_check_branch
      %57 = sbr.rel (0) target = $region29
    $region28: #{tpu_custom_call.1} parent=1 // pred_region
      _
    $region29: #{tpu_custom_call.1} parent=1 // pred_fallthru
      _
    // Predicated region
    $region30: #{tpu_custom_call.1} parent=1 // pred_check
      _
    $region31: #{tpu_custom_call.1} parent=1 // pred_check_branch
      %59 = sbr.rel (0) target = $region33
    $region32: #{tpu_custom_call.1} parent=1 // pred_region
      %s61 = ssub.s32 128, 128
      %62 = vsyncadd [#allocation8], %s61
      %s63 = sshll.u32 [#allocation9], 4
      %s64 = int_to_ptr.vmem [resolvable:$true] %s63
      %69 = dma.hbm_to_vmem [thread:$0]  %s7, 128, %s64, [#allocation8], 64, 64, 4
    $region33: #{tpu_custom_call.1} parent=1 // pred_fallthru
      _
    // Predicated region
    $region34: #{tpu_custom_call.1} parent=1 // pred_check
      _
    $region35: #{tpu_custom_call.1} parent=1 // pred_check_branch
      %71 = sbr.rel (0) target = $region37
    $region36: #{tpu_custom_call.1} parent=1 // pred_region
      %s73 = ssub.s32 256, 256
      %74 = vsyncadd [#allocation11], %s73
      %s75 = sshll.u32 [#allocation10], 4
      %s76 = int_to_ptr.vmem [resolvable:$true] %s75
      %81 = dma.hbm_to_vmem [thread:$0]  %s8, 256, %s76, [#allocation11], 64, 64, 4
    $region37: #{tpu_custom_call.1} parent=1 // pred_fallthru
      _
    // Predicated region
    $region38: #{tpu_custom_call.1} parent=1 // pred_check
      _
    $region39: #{tpu_custom_call.1} parent=1 // pred_check_branch
      %83 = sbr.rel (0) target = $region41
    $region40: #{tpu_custom_call.1} parent=1 // pred_region
      _
    $region41: #{tpu_custom_call.1} parent=1 // pred_fallthru
      _
    // Predicated region
    $region42: #{tpu_custom_call.1} parent=1 // pred_check
      _
    $region43: #{tpu_custom_call.1} parent=1 // pred_check_branch
      %85 = sbr.rel (0) target = $region45
    $region44: #{tpu_custom_call.1} parent=1 // pred_region
      %86 = dma.done [#allocation5], 16
    $region45: #{tpu_custom_call.1} parent=1 // pred_fallthru
      _
    // Predicated region
    $region46: #{tpu_custom_call.1} parent=1 // pred_check
      _
    $region47: #{tpu_custom_call.1} parent=1 // pred_check_branch
      %88 = sbr.rel (0) target = $region49
    $region48: #{tpu_custom_call.1} parent=1 // pred_region
      %89 = dma.done [#allocation3], 128
    $region49: #{tpu_custom_call.1} parent=1 // pred_fallthru
      _
    // Predicated region
    $region50: #{tpu_custom_call.1} parent=1 // pred_check
      _
    $region51: #{tpu_custom_call.1} parent=1 // pred_check_branch
      %91 = sbr.rel (0) target = $region53
    $region52: #{tpu_custom_call.1} parent=1 // pred_region
      %92 = dma.done [#allocation8], 16
    $region53: #{tpu_custom_call.1} parent=1 // pred_fallthru
      _
    // Predicated region
    $region54: #{tpu_custom_call.1} parent=1 // pred_check
      _
    $region55: #{tpu_custom_call.1} parent=1 // pred_check_branch
      %94 = sbr.rel (0) target = $region57
    $region56: #{tpu_custom_call.1} parent=1 // pred_region
      %95 = dma.done [#allocation8], 128
    $region57: #{tpu_custom_call.1} parent=1 // pred_fallthru
      _
    // Predicated region
    $region58: #{tpu_custom_call.1} parent=1 // pred_check
      _
    $region59: #{tpu_custom_call.1} parent=1 // pred_check_branch
      %97 = sbr.rel (0) target = $region61
    $region60: #{tpu_custom_call.1} parent=1 // pred_region
      %98 = dma.done [#allocation11], 256
    $region61: #{tpu_custom_call.1} parent=1 // pred_fallthru
      _
    %99 = sfence
    %v101 = vld [vmem:[%s2] sm:$0xf]
    %v102 = vunpack.c.l.bf16 %v101
    %vm103 = vcmask 261120
    %v104 = vsel %vm103, %v102, 0.0
    %v105 = vrot.slane %v104, 4
    %v106 = vadd.f32 %v104, %v105
    %v107 = vrot.slane %v106, 2
    %v108 = vadd.f32 %v106, %v107
    %v109 = vrot.slane %v108, 1
    %v110 = vadd.f32 %v108, %v109
    %v111 = vmul.f32 %v110, 0.125
    %s112 = scalar_lea.vmem %s2, 4
    %v113 = vld [vmem:[%s112] sm:$0xf]
    %v114 = vunpack.c.l.bf16 %v113
    %v115 = vsel %vm103, %v114, 0.0
    %v116 = vrot.slane %v115, 4
    %v117 = vadd.f32 %v115, %v116
    %v118 = vrot.slane %v117, 2
    %v119 = vadd.f32 %v117, %v118
    %v120 = vrot.slane %v119, 1
    %v121 = vadd.f32 %v119, %v120
    %v122 = vmul.f32 %v121, 0.125
    %vm123 = vcmask 1040384
    %v124 = vsel %vm123, %v111, %v122
    %v125 = vpack.c.bf16 %v124, %v124
    %v126 = vld [vmem:[%s4] sm:$0xf]
    %v127 = vld [vmem:[%s4 + $0x4] sm:$0xf]
    %v128 = vld [vmem:[%s4 + $0x8] sm:$0xf]
    %v129 = vld [vmem:[%s4 + $0xc] sm:$0xf]
    %v130 = vld [vmem:[#allocation7] sm:$0x1]
    %v132 = vlaneseq
    %v133 = vshrl.u32 %v132, 7
    %v134 = vsub.s32 0, %v133
    %v135 = vrot.slane %v130, %v134
    %v141 = vunpack.c.l.b16 %v126
    %v142 = vunpack.c.l.b16 %v127
    %v143 = vunpack.c.l.b16 %v128
    %v144 = vunpack.c.l.b16 %v129
    %v145 = vpack.c.b16 %v142, %v141
    %v146 = vpack.c.b16 %v144, %v143
    %v150 = vsel %vm103, %v125, 0
    %152 = vmatprep.subr.bf16.mxu0 0
    %153 = vmatpush1.bf16.msra.mxu0 0
    %154 = vmatprep.subr.bf16.mxu0 0
    %155 = vmatpush1.bf16.msra.mxu0 0
    %156 = vmatprep.subr.bf16.mxu0 0
    %157 = vmatpush1.bf16.msra.mxu0 0
    %158 = vmatprep.subr.bf16.mxu0 0
    %159 = vmatpush1.bf16.msra.mxu0 0
    %160 = vmatprep.subr.bf16.mxu0 0
    %161 = vmatpush1.bf16.msra.mxu0 0
    %162 = vmatprep.subr.bf16.mxu0 0
    %163 = vmatpush1.bf16.msra.mxu0 0
    %164 = vmatprep.subr.bf16.mxu0 0
    %165 = vmatpush1.bf16.msra.mxu0 %v146
    %166 = vmatprep.subr.bf16.mxu0 0
    %167 = vmatpush1.bf16.msra.mxu0 %v145
    %168 = vmatprep.subr.bf16.mxu0 0
    %169 = vmatpush2.bf16.msra.mxu0 0
    %170 = vmatprep.subr.bf16.mxu0 0
    %171 = vmatpush2.bf16.msra.mxu0 0
    %172 = vmatprep.subr.bf16.mxu0 0
    %173 = vmatpush2.bf16.msra.mxu0 0
    %174 = vmatprep.subr.bf16.mxu0 0
    %175 = vmatpush2.bf16.msra.mxu0 0
    %176 = vmatprep.subr.bf16.mxu0 0
    %177 = vmatpush2.bf16.msra.mxu0 0
    %178 = vmatprep.subr.bf16.mxu0 0
    %179 = vmatpush2.bf16.msra.mxu0 0
    %180 = vmatprep.subr.bf16.mxu0 0
    %181 = vmatpush2.bf16.msra.mxu0 0
    %182 = vmatprep.subr.bf16.mxu0 0
    %183 = vmatpush2.bf16.msra.mxu0 0
    %184 = vmatprep.mubr.bf16.mxu0 0
    %185 = vmatmul.mubr.bf16.gmra.mxu0 %v150
    %v186 = vpop.f32.mrf.mxu0
    %v187 = vadd.f32 %v135, %v186
    %v188 = vpop.f32.mrf.mxu0
    %v189 = vpop.f32.mrf.mxu0
    %v190 = vpop.f32.mrf.mxu0
    %191 = vdwg.mxu0
    %v192 = vmul.f32 %v187, 0.5
    %v193 = vmul.f32 %v192, 1.442695
    %v194 = vpow.pop %v193
    %v195 = vmul.f32 %v194, %v194
    %v196 = vld [vmem:[%s6] sm:$0x3]
    %198 = vrot.lane.b32.xlu0 %v194, 112
    %v199 = vpop.permute.xlu0 %198
    %v201 = vmul.f32 %v196, %v199
    %v202 = vadd.f32 %v187, %v201
    %v203 = vmul.f32 %v187, %v187
    %205 = vrot.lane.b32.xlu0 %v195, 112
    %v206 = vpop.permute.xlu0 %205
    %v208 = vadd.f32 %v203, %v206
    %210 = vrot.lane.b32.xlu0 %v187, 112
    %v211 = vpop.permute.xlu0 %210
    %v213 = vsub.f32 %v208, %v211
    %v214 = vsub.f32 %v213, 1.0
    %v215 = vmul.f32 %v214, 0.5
    %vm216 = vcmask 123904
    %v217 = vsel %vm216, %v215, 0.0
    %218 = vadd.xlane.f32.xlu0 %v217
    %v219 = vpop.xlane.xlu0 %218
    %v220 = vrot.slane %v219, 4
    %v221 = vadd.f32 %v219, %v220
    %v222 = vrot.slane %v221, 2
    %v223 = vadd.f32 %v221, %v222
    %v224 = vrot.slane %v223, 1
    %v225 = vadd.f32 %v223, %v224
    %s226 = vtos %v225
    %v227 = vstv %s226
    %v228 = vpack.c.bf16 %v202, %v202
    %v229 = vld [vmem:[#allocation9] sm:$0xf]
    %v230 = vld [vmem:[#allocation9 + $0x4] sm:$0xf]
    %v233 = vunpack.c.l.b16 %v229
    %v234 = vunpack.c.l.b16 %v230
    %v235 = vpack.c.b16 %v234, %v233
    %vm237 = vcmask 130048
    %v239 = vsel %vm237, %v228, 0
    %241 = vmatprep.subr.bf16.mxu0 0
    %242 = vmatpush1.bf16.msra.mxu0 0
    %243 = vmatprep.subr.bf16.mxu0 0
    %244 = vmatpush1.bf16.msra.mxu0 0
    %245 = vmatprep.subr.bf16.mxu0 0
    %246 = vmatpush1.bf16.msra.mxu0 0
    %247 = vmatprep.subr.bf16.mxu0 0
    %248 = vmatpush1.bf16.msra.mxu0 0
    %249 = vmatprep.subr.bf16.mxu0 0
    %250 = vmatpush1.bf16.msra.mxu0 0
    %251 = vmatprep.subr.bf16.mxu0 0
    %252 = vmatpush1.bf16.msra.mxu0 0
    %253 = vmatprep.subr.bf16.mxu0 0
    %254 = vmatpush1.bf16.msra.mxu0 0
    %255 = vmatprep.subr.bf16.mxu0 0
    %256 = vmatpush1.bf16.msra.mxu0 %v235
    %257 = vmatprep.subr.bf16.mxu0 0
    %258 = vmatpush2.bf16.msra.mxu0 0
    %259 = vmatprep.subr.bf16.mxu0 0
    %260 = vmatpush2.bf16.msra.mxu0 0
    %261 = vmatprep.subr.bf16.mxu0 0
    %262 = vmatpush2.bf16.msra.mxu0 0
    %263 = vmatprep.subr.bf16.mxu0 0
    %264 = vmatpush2.bf16.msra.mxu0 0
    %265 = vmatprep.subr.bf16.mxu0 0
    %266 = vmatpush2.bf16.msra.mxu0 0
    %267 = vmatprep.subr.bf16.mxu0 0
    %268 = vmatpush2.bf16.msra.mxu0 0
    %269 = vmatprep.subr.bf16.mxu0 0
    %270 = vmatpush2.bf16.msra.mxu0 0
    %271 = vmatprep.subr.bf16.mxu0 0
    %272 = vmatpush2.bf16.msra.mxu0 0
    %273 = vmatprep.mubr.bf16.mxu0 0
    %274 = vmatmul.mubr.bf16.gmra.mxu0 %v239
    %v275 = vpop.f32.mrf.mxu0
    %v276 = vadd.f32 0.0, %v275
    %v277 = vpop.f32.mrf.mxu0
    %v278 = vpop.f32.mrf.mxu0
    %v279 = vpop.f32.mrf.mxu0
    %280 = vdwg.mxu0
    %v281 = vld [vmem:[#allocation6] sm:$0xf]
    %v282 = vunpack.c.l.bf16 %v281
    %v283 = vlaneseq
    %v284 = vshrl.u32 %v283, 7
    %v285 = vsub.s32 0, %v284
    %v286 = vrot.slane %v276, %v285
    %v287 = vadd.f32 %v282, %v286
    %v288 = vtanh.pop %v287
    %s289 = scalar_lea.vmem [#allocation6], 4
    %v290 = vld [vmem:[%s289] sm:$0xf]
    %v291 = vunpack.c.l.bf16 %v290
    %v292 = vlaneseq
    %v293 = vshrl.u32 %v292, 7
    %v294 = vsub.s32 1, %v293
    %v295 = vrot.slane %v276, %v294
    %v296 = vadd.f32 %v291, %v295
    %v297 = vtanh.pop %v296
    %v298 = vpack.c.bf16 %v297, %v288
    %v299 = vld [vmem:[#allocation10] sm:$0xf]
    %v300 = vld [vmem:[#allocation10 + $0x4] sm:$0xf]
    %v301 = vld [vmem:[#allocation10 + $0x8] sm:$0xf]
    %v302 = vld [vmem:[#allocation10 + $0xc] sm:$0xf]
    %v303 = vld [vmem:[%s9] sm:$0x1]
    %v305 = vlaneseq
    %v306 = vshrl.u32 %v305, 7
    %v307 = vsub.s32 0, %v306
    %v308 = vrot.slane %v303, %v307
    %v314 = vunpack.c.l.b16 %v299
    %v315 = vunpack.c.l.b16 %v300
    %v316 = vunpack.c.l.b16 %v301
    %v317 = vunpack.c.l.b16 %v302
    %v318 = vpack.c.b16 %v315, %v314
    %v319 = vpack.c.b16 %v317, %v316
    %v323 = vsel %vm103, %v298, 0
    %325 = vmatprep.subr.bf16.mxu0 0
    %326 = vmatpush1.bf16.msra.mxu0 0
    %327 = vmatprep.subr.bf16.mxu0 0
    %328 = vmatpush1.bf16.msra.mxu0 0
    %329 = vmatprep.subr.bf16.mxu0 0
    %330 = vmatpush1.bf16.msra.mxu0 0
    %331 = vmatprep.subr.bf16.mxu0 0
    %332 = vmatpush1.bf16.msra.mxu0 0
    %333 = vmatprep.subr.bf16.mxu0 0
    %334 = vmatpush1.bf16.msra.mxu0 0
    %335 = vmatprep.subr.bf16.mxu0 0
    %336 = vmatpush1.bf16.msra.mxu0 0
    %337 = vmatprep.subr.bf16.mxu0 0
    %338 = vmatpush1.bf16.msra.mxu0 %v319
    %339 = vmatprep.subr.bf16.mxu0 0
    %340 = vmatpush1.bf16.msra.mxu0 %v318
    %341 = vmatprep.subr.bf16.mxu0 0
    %342 = vmatpush2.bf16.msra.mxu0 0
    %343 = vmatprep.subr.bf16.mxu0 0
    %344 = vmatpush2.bf16.msra.mxu0 0
    %345 = vmatprep.subr.bf16.mxu0 0
    %346 = vmatpush2.bf16.msra.mxu0 0
    %347 = vmatprep.subr.bf16.mxu0 0
    %348 = vmatpush2.bf16.msra.mxu0 0
    %349 = vmatprep.subr.bf16.mxu0 0
    %350 = vmatpush2.bf16.msra.mxu0 0
    %351 = vmatprep.subr.bf16.mxu0 0
    %352 = vmatpush2.bf16.msra.mxu0 0
    %353 = vmatprep.subr.bf16.mxu0 0
    %354 = vmatpush2.bf16.msra.mxu0 0
    %355 = vmatprep.subr.bf16.mxu0 0
    %356 = vmatpush2.bf16.msra.mxu0 0
    %357 = vmatprep.mubr.bf16.mxu0 0
    %358 = vmatmul.mubr.bf16.gmra.mxu0 %v323
    %v359 = vpop.f32.mrf.mxu0
    %v360 = vadd.f32 %v308, %v359
    %v361 = vpop.f32.mrf.mxu0
    %v362 = vpop.f32.mrf.mxu0
    %v363 = vadd.f32 %v308, %v362
    %v364 = vpop.f32.mrf.mxu0
    %365 = vdwg.mxu0
    %366 = vmax.xlane.f32.xlu0 %v360
    %v367 = vpop.xlane.xlu0 %366
    %368 = vmax.xlane.f32.xlu0 %v363
    %v369 = vpop.xlane.xlu0 %368
    %v370 = vsub.f32 %v360, %v367
    %v371 = vsub.f32 %v363, %v369
    %v372 = vmul.f32 %v370, 1.442695
    %v373 = vpow.pop %v372
    %v374 = vmul.f32 %v371, 1.442695
    %v375 = vpow.pop %v374
    %376 = vadd.xlane.f32.xlu0 %v373
    %v377 = vpop.xlane.xlu0 %376
    %378 = vadd.xlane.f32.xlu0 %v375
    %v379 = vpop.xlane.xlu0 %378
    %v380 = vlog2.pop %v377
    %v381 = vmul.f32 %v380, 0.6931472
    %v382 = vlog2.pop %v379
    %v383 = vmul.f32 %v382, 0.6931472
    %v384 = vadd.f32 %v381, %v367
    %v385 = vadd.f32 %v383, %v369
    %v386 = vlaneseq
    %v387 = vand.u32 %v386, 127
    %v388 = vld [vmem:[%s1] sm:$0xff]
    %v389 = vld [vmem:[%s1 + $0x8] sm:$0xff]
    %390 = vset.pattern.permute.xlu0 0
    %391 = vperm.xlu0 %390, %v388
    %v392 = vpop.permute.xlu0 %391
    %393 = vset.pattern.permute.xlu0 0
    %394 = vperm.xlu0 %393, %v389
    %v395 = vpop.permute.xlu0 %394
    %vm396 = vcmp.eq.s32.totalorder %v387, %v392
    %vm397 = vcmp.eq.s32.totalorder %v387, %v395
    %v398 = vsel %vm396, %v360, 0.0
    %v399 = vsel %vm397, %v363, 0.0
    %400 = vadd.xlane.f32.xlu0 %v398
    %v401 = vpop.xlane.xlu0 %400
    %402 = vadd.xlane.f32.xlu0 %v399
    %v403 = vpop.xlane.xlu0 %402
    %v404 = vsub.f32 %v384, %v401
    %v405 = vsub.f32 %v385, %v403
    %vm406 = vcmask 7168
    %v407 = vsel %vm406, %v404, 0.0
    %v408 = vsel %vm406, %v405, 0.0
    %v409 = vadd.f32 %v407, %v408
    %410 = vadd.xlane.f32.xlu0 %v409
    %v411 = vpop.xlane.xlu0 %410
    %v412 = vrot.slane %v411, 4
    %v413 = vadd.f32 %v411, %v412
    %v414 = vrot.slane %v413, 2
    %v415 = vadd.f32 %v413, %v414
    %v416 = vrot.slane %v415, 1
    %v417 = vadd.f32 %v415, %v416
    %s418 = vtos %v417
    %v419 = vstv %s418
    %s420 = sld [smem:[#allocation2]]
    %s421 = sld [smem:[#allocation2 + $0x1]]
    %v422 = vmul.f32 %v419, 0.5
    %v423 = vmul.f32 %v227, 0.5
    %v424 = vstv %s421
    %v425 = vmul.f32 %v423, %v424
    %v426 = vstv %s420
    %v427 = vmul.f32 %v425, %v426
    %v428 = vadd.f32 %v422, %v427
    %vm429 = vcmp.eq.s32.totalorder %v387, 0
    %vm430 = vcmp.eq.s32.totalorder %v387, 1
    %vm431 = vcmp.eq.s32.totalorder %v387, 2
    %v432 = vsel %vm431, %v425, 0.0
    %v433 = vsel %vm430, %v422, %v432
    %v434 = vsel %vm429, %v428, %v433
    %435 = vst [vmem:[#allocation12] sm:$0x1] %v434
    // Predicated region
    $region62: #{tpu_custom_call.1} parent=1 // pred_check
      _
    $region63: #{tpu_custom_call.1} parent=1 // pred_check_branch
      %437 = sbr.rel (0) target = $region65
    $region64: #{tpu_custom_call.1} parent=1 // pred_region
      %s439 = ssub.s32 16, 16
      %440 = vsyncadd [#allocation4], %s439
      %s442 = sshll.u32 [#allocation12], 4
      %s443 = int_to_ptr.vmem [resolvable:$true] %s442
      %445 = dma.vmem_to_hbm [thread:$0]  %s443, 16, %s10, [#allocation4]
    $region65: #{tpu_custom_call.1} parent=1 // pred_fallthru
      _
    // Predicated region
    $region66: #{tpu_custom_call.1} parent=1 // pred_check
      _
    $region67: #{tpu_custom_call.1} parent=1 // pred_check_branch
      %447 = sbr.rel (0) target = $region69
    $region68: #{tpu_custom_call.1} parent=1 // pred_region
      %448 = dma.done [#allocation4], 16
    $region69: #{tpu_custom_call.1} parent=1 // pred_fallthru
      _
    %449 = vsyncpa [#allocation3], 1
    %450 = vsyncpa [#allocation8], 1
    %451 = vsyncpa [#allocation11], 1
    %452 = vsyncpa [#allocation4], 1
    %453 = vsyncpa [#allocation5], 1

</llo_original>
